<compile_context>
chip_gen: v6e
topology: v6e:2x2x1
jax: 0.10.0
libtpu: 0.0.40
codegen_flags: <defaults>
</compile_context>

<pallas_src>
import functools

import jax
import jax.numpy as jnp
from jax import lax
from jax.experimental import pallas as pl
from jax.experimental.pallas import tpu as pltpu

_EPS = 1e-8


def _reference(x, group_size, num_channels=1):
    """Pure-JAX transcription of the PyTorch forward (validation + rare fallback)."""
    N, C, H, W = x.shape
    G = N if group_size is None else min(int(group_size), N)
    F = num_channels
    c = C // F
    y = x.reshape(G, -1, F, c, H, W).astype(jnp.float32)
    y = y - y.mean(axis=0)
    y = jnp.mean(jnp.square(y), axis=0)
    y = jnp.sqrt(y + _EPS)
    y = y.mean(axis=(2, 3, 4))
    y = y.reshape(-1, F, 1, 1)
    y = jnp.tile(y, (G, 1, H, W)).astype(x.dtype)
    return jnp.concatenate([x, y], axis=1)


def _tpu_vmem_bytes():
    try:
        return int(pltpu.get_tpu_info().vmem_capacity_bytes)
    except Exception:
        return 64 * 1024 * 1024          # v7x-safe fallback


def _num_tensorcores():
    """2 on parts with two TensorCores per device (v7x, v4/v5p megacore), else 1."""
    try:
        kind = jax.devices()[0].device_kind.lower()
    except Exception:
        return 1
    if any(tag in kind for tag in ("v7", "7x", "v4", "v5p")):
        return 2
    return 1


def _largest_lane_tile(L, per_lane_bytes, budget_bytes, cap=None):
    """Largest multiple-of-128 divisor of L whose pipelined footprint fits budget."""
    if L % 128 != 0:
        return None
    limit = min(L, (budget_bytes // max(per_lane_bytes, 1)) // 128 * 128)
    if cap is not None:
        limit = min(limit, (cap // 128) * 128)
    tm = limit
    while tm >= 128:
        if L % tm == 0:
            return tm
        tm -= 128
    return None


def _fused_kernel(x_ref, out_ref, acc_ref, *, nb, hw, m_per_f, num_f, inv_m):
    """Fused passthrough copy + group-stddev reduction + stat-channel writeback.

    x_ref   : (G, NGc, TM) tile of x viewed as (G, NG, C*H*W)
    out_ref : (G, NGc, TM) tile of the output viewed as (G, NG, (C+F)*H*W)
    acc_ref : (NGc, F) f32 running column-sum of sqrt(var + eps)
    """
    k = pl.program_id(1)
    G, NGc, TM = x_ref.shape

    @pl.when(k == 0)
    def _init():
        acc_ref[...] = jnp.zeros_like(acc_ref)

    @pl.when(k < nb)
    def _reduce_and_copy():
        # Passthrough: identical (G, NGc, TM) layout in and out -> plain copy.
        out_ref[...] = x_ref[...].astype(out_ref.dtype)

        # Two-pass (centered) variance over the group axis, matching the
        # reference numerics.  Per-group slices keep f32 temporaries at
        # O(NGc*TM) instead of O(G*NGc*TM).
        def _accumulate(fn):
            init = jnp.zeros((NGc, TM), jnp.float32)
            if G <= 16:                              # static unroll, small G
                s = init
                for g in range(G):
                    s = s + fn(x_ref[g].astype(jnp.float32))
                return s
            return lax.fori_loop(
                0, G, lambda g, s: s + fn(x_ref[g].astype(jnp.float32)), init)

        inv_g = 1.0 / G
        mean = _accumulate(lambda xg: xg) * inv_g
        ss = _accumulate(lambda xg: (xg - mean) * (xg - mean))
        std = jnp.sqrt(ss * inv_g + _EPS)            # (NGc, TM)

        if num_f == 1:
            acc_ref[...] = acc_ref[...] + jnp.sum(std, axis=1, keepdims=True)
        else:
            # Lane column -> feature-stat group f = col // (c*H*W).
            col = k * TM + lax.broadcasted_iota(jnp.int32, (NGc, TM), 1)
            fcol = col // m_per_f
            for f in range(num_f):
                upd = jnp.sum(jnp.where(fcol == f, std, 0.0), axis=1,
                              keepdims=True)
                acc_ref[:, f:f + 1] = acc_ref[:, f:f + 1] + upd

    @pl.when(k >= nb)
    def _write_stats():
        # Epilogue: output columns [F*M, F*M + F*H*W); stat channel f holds the
        # constant acc[ng, f] / M.  Lanes past `wide` are clipped by Pallas on
        # writeback of the boundary block.
        stat = acc_ref[...] * inv_m                  # (NGc, F)
        if num_f == 1:
            vals = jnp.broadcast_to(stat, (NGc, TM))
        else:
            r = (k - nb) * TM + lax.broadcasted_iota(jnp.int32, (NGc, TM), 1)
            fcol = jnp.minimum(r // hw, num_f - 1)
            vals = jnp.zeros((NGc, TM), jnp.float32)
            for f in range(num_f):
                vals = jnp.where(fcol == f, stat[:, f:f + 1], vals)
        out_ref[...] = jnp.broadcast_to(vals[None],
                                        (G, NGc, TM)).astype(out_ref.dtype)


def minibatch_std(x, group_size, num_channels=1, *, max_tile_lanes=None,
                  force_row_split=None):
    """JAX/Pallas equivalent of MinibatchStdLayer.forward (NCHW in / NCHW out)."""
    N, C, H, W = x.shape
    G = N if group_size is None else min(int(group_size), N)
    F = int(num_channels)
    assert N % G == 0, "batch must be divisible by group size"
    assert C % F == 0, "channels must be divisible by num_channels"
    c = C // F
    NG = N // G                          # group rows
    HW = H * W
    M = c * HW                           # reduced columns per (row, f)
    L = C * HW                           # passthrough lane width (= F*M)
    wide = (C + F) * HW
    itemsize = jnp.dtype(x.dtype).itemsize

    # Per-generation VMEM budget (v5e/v6e: 128 MiB, v7x: 64 MiB physical).
    vmem_cap = _tpu_vmem_bytes()
    tile_budget = vmem_cap // 4
    vmem_limit = min((vmem_cap * 3) // 4, 96 * 1024 * 1024)

    # Dual-TensorCore (v7x / megacore) split of the group-row axis.
    sub = 8 * max(1, 4 // itemsize)      # legal sublane block multiple for dtype
    want_split = (_num_tensorcores() >= 2 if force_row_split is None
                  else bool(force_row_split))
    row_block = NG
    if want_split and NG > sub:
        half = -(-NG // 2)
        half = -(-half // sub) * sub     # round up to a legal sublane block
        if half < NG:
            row_block = half
    n_row_blocks = -(-NG // row_block)

    # Largest lane tile (multiple of 128, divisor of L) fitting the budget:
    # double-buffered in + out tiles plus the f32 reduction temporaries.
    per_lane_bytes = 4 * G * row_block * itemsize + 32 * row_block
    tm = _largest_lane_tile(L, per_lane_bytes, tile_budget, cap=max_tile_lanes)
    if tm is None:
        # TODO(synk): lane-mask the last partial tile instead of falling back
        # when C*H*W is not a multiple of 128 (rare for real GAN feature maps).
        return _reference(x, group_size, num_channels)

    nb = L // tm                          # reduce / passthrough steps
    extra = -(-(F * HW) // tm)            # epilogue steps for the stat columns

    x3 = x.reshape(G, NG, L)              # zero-copy, lane-dense view
    out3 = pl.pallas_call(
        functools.partial(_fused_kernel, nb=nb, hw=HW, m_per_f=M, num_f=F,
                          inv_m=1.0 / M),
        out_shape=jax.ShapeDtypeStruct((G, NG, wide), x.dtype),
        grid=(n_row_blocks, nb + extra),
        in_specs=[pl.BlockSpec((G, row_block, tm),
                               lambda p, k: (0, p, jnp.minimum(k, nb - 1)))],
        out_specs=pl.BlockSpec((G, row_block, tm), lambda p, k: (0, p, k)),
        scratch_shapes=[pltpu.VMEM((row_block, F), jnp.float32)],
        compiler_params=pltpu.CompilerParams(
            dimension_semantics=("parallel", "arbitrary"),
            vmem_limit_bytes=vmem_limit),
        cost_estimate=pl.CostEstimate(
            flops=8 * x.size,
            transcendentals=x.size // G,
            bytes_accessed=2 * x.size * itemsize + N * F * HW * itemsize),
    )(x3)
    return out3.reshape(N, C + F, H, W)


if __name__ == "__main__":
    key = jax.random.PRNGKey(0)
    N, C, H, W = 2, 4, 16, 16
    x = jax.random.normal(key, (N, C, H, W), dtype=jnp.float32)

    # 1) Whole-L tile fused path (1 reduce step + 1 epilogue step).
    out = jax.block_until_ready(minibatch_std(x, group_size=2, num_channels=1))
    ref = _reference(x, 2, 1)
    assert out.shape == (N, C + 1, H, W), out.shape
    assert float(jnp.max(jnp.abs(out - ref))) < 1e-4, "fused F=1 path mismatch"

    # 2) num_channels > 1 now runs fully fused too (masked per-f reduction).
    out2 = jax.block_until_ready(minibatch_std(x, group_size=2, num_channels=2))
    ref2 = _reference(x, 2, 2)
    assert out2.shape == (N, C + 2, H, W), out2.shape
    assert float(jnp.max(jnp.abs(out2 - ref2))) < 1e-4, "fused F=2 path mismatch"

    # 3) Force several lane tiles to exercise the resident accumulator pipeline.
    out3 = jax.block_until_ready(
        minibatch_std(x, group_size=2, num_channels=1, max_tile_lanes=256))
    assert float(jnp.max(jnp.abs(out3 - ref))) < 1e-4, "multi-tile path mismatch"

    # 4) Dual-TensorCore row split (forced so the path runs on any chip).
    xb = jax.random.normal(jax.random.PRNGKey(1), (64, 8, 4, 4), dtype=jnp.float32)
    out4 = jax.block_until_ready(
        minibatch_std(xb, group_size=4, num_channels=1, force_row_split=True))
    ref4 = _reference(xb, 4, 1)
    assert float(jnp.max(jnp.abs(out4 - ref4))) < 1e-4, "row-split path mismatch"

    # 5) group_size=None (one group = whole batch, fori_loop reduction) + F=2.
    out5 = jax.block_until_ready(minibatch_std(xb, group_size=None, num_channels=2))
    ref5 = _reference(xb, None, 2)
    assert float(jnp.max(jnp.abs(out5 - ref5))) < 1e-4, "group_size=None mismatch"

    print("KERNEL_OK")
</pallas_src>

<mosaic_0001>
module attributes {stable_mosaic.version = 11 : i64} {
  func.func @_fused_kernel(%arg0: i32, %arg1: i32, %arg2: memref<2x1x1024xf32, #tpu.memory_space<vmem>>, %arg3: memref<2x1x1024xf32, #tpu.memory_space<vmem>>, %arg4: memref<1x1xf32, #tpu.memory_space<vmem>>) attributes {dimension_semantics = [#tpu.dimension_semantics<parallel>, #tpu.dimension_semantics<arbitrary>], iteration_bounds = array<i64: 1, 2>, scalar_prefetch = 0 : i64, scratch_operands = 1 : i64, tpu.core_type = #tpu.core_type<tc>, window_params = [{transform_indices = @transform_0, window_bounds = array<i64: 2, 1, 1024>}, {transform_indices = @transform_1, window_bounds = array<i64: 2, 1, 1024>}]} {
    %c0_i32 = arith.constant 0 : i32
    %0 = arith.cmpi eq, %arg1, %c0_i32 : i32
    %1 = arith.extui %0 : i1 to i32
    %c0_i32_0 = arith.constant 0 : i32
    %2 = arith.cmpi ne, %1, %c0_i32_0 : i32
    scf.if %2 {
      %cst = arith.constant 0.000000e+00 : f32
      %9 = vector.broadcast %cst : f32 to vector<1x1xf32>
      %c0 = arith.constant 0 : index
      %c0_4 = arith.constant 0 : index
      %10 = vector.load %arg4[%c0, %c0_4] : memref<1x1xf32, #tpu.memory_space<vmem>>, vector<1x1xf32>
      tpu.vector_store %arg4[%c0, %c0_4], %9 {strides = array<i32>} : memref<1x1xf32, #tpu.memory_space<vmem>>, vector<1x1xf32>,
    } else {
    }
    %c1_i32 = arith.constant 1 : i32
    %3 = arith.cmpi slt, %arg1, %c1_i32 : i32
    %4 = arith.extui %3 : i1 to i32
    %c0_i32_1 = arith.constant 0 : i32
    %5 = arith.cmpi ne, %4, %c0_i32_1 : i32
    scf.if %5 {
      %c0 = arith.constant 0 : index
      %c0_4 = arith.constant 0 : index
      %c0_5 = arith.constant 0 : index
      %9 = vector.load %arg2[%c0, %c0_4, %c0_5] : memref<2x1x1024xf32, #tpu.memory_space<vmem>>, vector<2x1x1024xf32>
      %c0_6 = arith.constant 0 : index
      %c0_7 = arith.constant 0 : index
      %c0_8 = arith.constant 0 : index
      %10 = vector.load %arg3[%c0_6, %c0_7, %c0_8] : memref<2x1x1024xf32, #tpu.memory_space<vmem>>, vector<2x1x1024xf32>
      tpu.vector_store %arg3[%c0_6, %c0_7, %c0_8], %9 {strides = array<i32>} : memref<2x1x1024xf32, #tpu.memory_space<vmem>>, vector<2x1x1024xf32>,
      %cst = arith.constant 0.000000e+00 : f32
      %11 = vector.broadcast %cst : f32 to vector<1x1024xf32>
      %c0_9 = arith.constant 0 : index
      %c0_10 = arith.constant 0 : index
      %c0_11 = arith.constant 0 : index
      %12 = vector.load %arg2[%c0_9, %c0_10, %c0_11] : memref<2x1x1024xf32, #tpu.memory_space<vmem>>, vector<1x1x1024xf32>
      %13 = vector.shape_cast %12 : vector<1x1x1024xf32> to vector<1x1024xf32>
      %14 = arith.addf %11, %13 : vector<1x1024xf32>
      %c1 = arith.constant 1 : index
      %c0_12 = arith.constant 0 : index
      %c0_13 = arith.constant 0 : index
      %15 = vector.load %arg2[%c1, %c0_12, %c0_13] : memref<2x1x1024xf32, #tpu.memory_space<vmem>>, vector<1x1x1024xf32>
      %16 = vector.shape_cast %15 : vector<1x1x1024xf32> to vector<1x1024xf32>
      %17 = arith.addf %14, %16 : vector<1x1024xf32>
      %cst_14 = arith.constant 5.000000e-01 : f32
      %18 = vector.broadcast %cst_14 : f32 to vector<1x1024xf32>
      %19 = arith.mulf %17, %18 : vector<1x1024xf32>
      %cst_15 = arith.constant 0.000000e+00 : f32
      %20 = vector.broadcast %cst_15 : f32 to vector<1x1024xf32>
      %c0_16 = arith.constant 0 : index
      %c0_17 = arith.constant 0 : index
      %c0_18 = arith.constant 0 : index
      %21 = vector.load %arg2[%c0_16, %c0_17, %c0_18] : memref<2x1x1024xf32, #tpu.memory_space<vmem>>, vector<1x1x1024xf32>
      %22 = vector.shape_cast %21 : vector<1x1x1024xf32> to vector<1x1024xf32>
      %23 = arith.subf %22, %19 : vector<1x1024xf32>
      %24 = arith.subf %22, %19 : vector<1x1024xf32>
      %25 = arith.mulf %23, %24 : vector<1x1024xf32>
      %26 = arith.addf %20, %25 : vector<1x1024xf32>
      %c1_19 = arith.constant 1 : index
      %c0_20 = arith.constant 0 : index
      %c0_21 = arith.constant 0 : index
      %27 = vector.load %arg2[%c1_19, %c0_20, %c0_21] : memref<2x1x1024xf32, #tpu.memory_space<vmem>>, vector<1x1x1024xf32>
      %28 = vector.shape_cast %27 : vector<1x1x1024xf32> to vector<1x1024xf32>
      %29 = arith.subf %28, %19 : vector<1x1024xf32>
      %30 = arith.subf %28, %19 : vector<1x1024xf32>
      %31 = arith.mulf %29, %30 : vector<1x1024xf32>
      %32 = arith.addf %26, %31 : vector<1x1024xf32>
      %cst_22 = arith.constant 5.000000e-01 : f32
      %33 = vector.broadcast %cst_22 : f32 to vector<1x1024xf32>
      %34 = arith.mulf %32, %33 : vector<1x1024xf32>
      %cst_23 = arith.constant 9.99999993E-9 : f32
      %35 = vector.broadcast %cst_23 : f32 to vector<1x1024xf32>
      %36 = arith.addf %34, %35 : vector<1x1024xf32>
      %37 = math.sqrt %36 : vector<1x1024xf32>
      %c0_24 = arith.constant 0 : index
      %c0_25 = arith.constant 0 : index
      %38 = vector.load %arg4[%c0_24, %c0_25] : memref<1x1xf32, #tpu.memory_space<vmem>>, vector<1x1xf32>
      %cst_26 = arith.constant dense<0.000000e+00> : vector<1xf32>
      %39 = vector.multi_reduction <add>, %37, %cst_26 [1] : vector<1x1024xf32> to vector<1xf32>
      %40 = vector.shape_cast %39 : vector<1xf32> to vector<1x1xf32>
      %41 = arith.addf %38, %40 : vector<1x1xf32>
      %c0_27 = arith.constant 0 : index
      %c0_28 = arith.constant 0 : index
      %42 = vector.load %arg4[%c0_27, %c0_28] : memref<1x1xf32, #tpu.memory_space<vmem>>, vector<1x1xf32>
      tpu.vector_store %arg4[%c0_27, %c0_28], %41 {strides = array<i32>} : memref<1x1xf32, #tpu.memory_space<vmem>>, vector<1x1xf32>,
    } else {
    }
    %c1_i32_2 = arith.constant 1 : i32
    %6 = arith.cmpi sge, %arg1, %c1_i32_2 : i32
    %7 = arith.extui %6 : i1 to i32
    %c0_i32_3 = arith.constant 0 : i32
    %8 = arith.cmpi ne, %7, %c0_i32_3 : i32
    scf.if %8 {
      %c0 = arith.constant 0 : index
      %c0_4 = arith.constant 0 : index
      %9 = vector.load %arg4[%c0, %c0_4] : memref<1x1xf32, #tpu.memory_space<vmem>>, vector<1x1xf32>
      %cst = arith.constant 9.765625E-4 : f32
      %10 = vector.broadcast %cst : f32 to vector<1x1xf32>
      %11 = arith.mulf %9, %10 : vector<1x1xf32>
      %12 = vector.shape_cast %11 : vector<1x1xf32> to vector<1x1xf32>
      %13 = vector.broadcast %12 : vector<1x1xf32> to vector<1x1024xf32>
      %14 = vector.shape_cast %13 : vector<1x1024xf32> to vector<1x1x1024xf32>
      %15 = vector.shape_cast %14 : vector<1x1x1024xf32> to vector<1x1x1024xf32>
      %16 = vector.broadcast %15 : vector<1x1x1024xf32> to vector<2x1x1024xf32>
      %c0_5 = arith.constant 0 : index
      %c0_6 = arith.constant 0 : index
      %c0_7 = arith.constant 0 : index
      %17 = vector.load %arg3[%c0_5, %c0_6, %c0_7] : memref<2x1x1024xf32, #tpu.memory_space<vmem>>, vector<2x1x1024xf32>
      tpu.vector_store %arg3[%c0_5, %c0_6, %c0_7], %16 {strides = array<i32>} : memref<2x1x1024xf32, #tpu.memory_space<vmem>>, vector<2x1x1024xf32>,
    } else {
    }
    return
  }
  func.func @transform_0(%arg0: i32, %arg1: i32) -> (i32, i32, i32) {
    %c0_i32 = arith.constant 0 : i32
    %0 = arith.minsi %arg1, %c0_i32 : i32
    %c0_i32_0 = arith.constant 0 : i32
    %c0_i32_1 = arith.constant 0 : i32
    return %c0_i32_0, %arg0, %0 : i32, i32, i32
  }
  func.func @transform_1(%arg0: i32, %arg1: i32) -> (i32, i32, i32) {
    %c0_i32 = arith.constant 0 : i32
    %c0_i32_0 = arith.constant 0 : i32
    return %c0_i32, %arg0, %arg1 : i32, i32, i32
  }
}

</mosaic_0001>

<llo_original>
// kernel: tpu_custom_call.1
$region0: #{tpu_custom_call.1}
  #allocation0 [shape = 'u32[]', space=smem, size = 0x4, offset = 0x4, fixed_abs, tag = 'smem constant byte address 0x4 - core index']
  #allocation1 [shape = 'u32[144,128]{1,0:T(1,128)}', space=vmem, size = 0x12000, scoped, tag = 'internal scratch']
  #allocation2 [shape = 'f32[1,1]{1,0:T(1,128)}', space=vmem, size = 0x200, scoped, tag = 'scratch operand']
  %s0 = inlined_call_operand.hbm [shape: f32[2,1,1024], index: 0, kind: input, shape index: {}]
  %s1 = inlined_call_operand.hbm [shape: f32[2,1,1280], index: 1, kind: output, shape index: {}]
  %s2 = sld [smem:[#allocation0]]
  $region53: #{tpu_custom_call.1} parent=0
    _
  %s4 = ssub.s32 1, %s2
  %s5 = scalar_select 0, %s4, %s2
  $region1: #{tpu_custom_call.1} parent=0
    #allocation3 [shape = 'u8[16384]{0}', space=vmem, size = 0x4000, scoped, tag = 'input window, operand 0']
    #allocation4 [shape = 's32[2]{0}', space=sflag, size = 0x8, scoped, tag = 'scoped memory for tpu_custom_call.1']
    #allocation5 [shape = 's32[2]{0}', space=sflag, size = 0x8, scoped, tag = 'scoped memory for tpu_custom_call.1']
    #allocation6 [shape = 'u8[16384]{0}', space=vmem, size = 0x4000, scoped, tag = 'output window, operand 0']
    %6 = vsyncpa [#allocation4], 0
    %s7 = scalar_lea.sflag [#allocation4], 1
    %8 = vsyncpa %s7, 0
    %9 = vsyncpa [#allocation5], 0
    %s10 = scalar_lea.sflag [#allocation5], 1
    %11 = vsyncpa %s10, 0
    loop: start=0, step=1, limit=4
    $region2: #{tpu_custom_call.1} parent=1 // loop_pre_header
      _
    $region3: #{tpu_custom_call.1} parent=1 // loop_header
      %s13 = sphi 0, %s17
      %p14 = scmp.ge.s32.totalorder %s13, 4
      %s20 = sphi 0, %s32
      %s21 = sphi 0, %s28
      %s22 = sphi 0, %s20
      %s23 = sphi 0, %s21
      %s24 = sphi 0, %s22
      %s25 = sphi 0, %s23
      %s41 = sphi 0, %s43
      %s44 = sphi 0, %s41
      %s45 = sphi 0, %s44
      %s61 = sphi 0, %s45
      %s69 = sphi 0, %s71
      %s72 = sphi 0, %s69
      %s73 = sphi 0, %s72
      %s89 = sphi 0, %s73
    $region4: #{tpu_custom_call.1} parent=1 // loop_header_branch
      %16 = sbr.rel (%p14) target = $region8
    $region5: #{tpu_custom_call.1} parent=1 // loop_body
      %s18 = ssub.s32 %s13, 1
      %s19 = ssub.s32 %s13, 2
      %s26 = sadd.s32 1, %s21
      %p27 = scmp.ge.s32.totalorder %s26, 2
      %s28 = scalar_select %p27, 0, %s26
      %s29 = sadd.s32 1, %s20
      %s30 = scalar_select %p27, %s29, %s20
      %p31 = scmp.ge.s32.totalorder %s30, 1
      %s32 = scalar_select %p31, 0, %s30
      %p33 = scmp.lt.s32.totalorder %s21, 0
      %s34 = scalar_select %p33, %s21, 0
      %p35 = scmp.lt.s32.totalorder %s28, 0
      %s36 = scalar_select %p35, %s28, 0
      %s37 = ssub.s32 %s20, %s32
      %s38 = ssub.s32 %s34, %s36
      %s39 = sor.u32 %s37, %s38
      %p40 = scmp.eq.s32.totalorder %s39, 0
      %s42 = sadd.s32 %s41, 1
      %s43 = scalar_select %p40, %s41, %s42
      %p46 = pneg %p40
      %p47 = scmp.eq.s32.totalorder %s13, 1
      %p48 = por %p46, %p47
      %p49 = scmp.ne.s32.totalorder %s41, %s44
      %p50 = scmp.eq.s32.totalorder %s13, 0
      %p51 = por %p49, %p50
      %p52 = scmp.ne.s32.totalorder %s41, %s44
      %p53 = scmp.eq.s32.totalorder %s18, 1
      %p54 = por %p52, %p53
      %p55 = scmp.ne.s32.totalorder %s44, %s45
      %p56 = scmp.eq.s32.totalorder %s18, 0
      %p57 = por %p55, %p56
      %p58 = scmp.ne.s32.totalorder %s44, %s45
      %p59 = scmp.eq.s32.totalorder %s19, 1
      %p60 = por %p58, %p59
      %p62 = scmp.ne.s32.totalorder %s45, %s61
      %p63 = scmp.eq.s32.totalorder %s19, 0
      %p64 = por %p62, %p63
      %s65 = ssub.s32 %s20, %s32
      %s66 = ssub.s32 %s21, %s28
      %s67 = sor.u32 %s65, %s66
      %p68 = scmp.eq.s32.totalorder %s67, 0
      %s70 = sadd.s32 %s69, 1
      %s71 = scalar_select %p68, %s69, %s70
      %p74 = pneg %p68
      %p75 = scmp.eq.s32.totalorder %s13, 1
      %p76 = por %p74, %p75
      %p77 = scmp.ne.s32.totalorder %s69, %s72
      %p78 = scmp.eq.s32.totalorder %s13, 0
      %p79 = por %p77, %p78
      %p80 = scmp.ne.s32.totalorder %s69, %s72
      %p81 = scmp.eq.s32.totalorder %s18, 1
      %p82 = por %p80, %p81
      %p83 = scmp.ne.s32.totalorder %s72, %s73
      %p84 = scmp.eq.s32.totalorder %s18, 0
      %p85 = por %p83, %p84
      %p86 = scmp.ne.s32.totalorder %s72, %s73
      %p87 = scmp.eq.s32.totalorder %s19, 1
      %p88 = por %p86, %p87
      %p90 = scmp.ne.s32.totalorder %s73, %s89
      %p91 = scmp.eq.s32.totalorder %s19, 0
      %p92 = por %p90, %p91
      %p93 = scmp.le.s32.totalorder 1, %s13
      %p94 = scmp.lt.s32.totalorder %s13, 3
      %p95 = pnand %p93, %p94
      %p96 = pneg %p95
      // Predicated region
      $region9: #{tpu_custom_call.1} parent=5 // pred_check
        _
      $region10: #{tpu_custom_call.1} parent=5 // pred_check_branch
        %98 = sbr.rel (%p95) target = $region12
      $region11: #{tpu_custom_call.1} parent=5 // pred_region
        %s99 = ssub.s32 %s13, 1
      $region12: #{tpu_custom_call.1} parent=5 // pred_fallthru
        _
      %p100 = scmp.lt.s32.totalorder %s13, 2
      // Predicated region
      $region13: #{tpu_custom_call.1} parent=5 // pred_check
        %p101 = pneg %p100
      $region14: #{tpu_custom_call.1} parent=5 // pred_check_branch
        %103 = sbr.rel (%p101) target = $region16
      $region15: #{tpu_custom_call.1} parent=5 // pred_region
        // Predicated region
        $region17: #{tpu_custom_call.1} parent=15 // pred_check
          %p104 = pneg %p51
        $region18: #{tpu_custom_call.1} parent=15 // pred_check_branch
          %106 = sbr.rel (%p104) target = $region20
        $region19: #{tpu_custom_call.1} parent=15 // pred_region
          %s107 = sand.u32 %s41, 1
          %s108 = scalar_lea.sflag [#allocation4], %s107
          %s109 = sand.u32 %s41, 1
          %s110 = smul.addr %s109, 16
          %s111 = scalar_lea.vmem [#allocation3], %s110
          %p112 = scmp.lt.s32.totalorder %s21, 0
          %s113 = scalar_select %p112, %s21, 0
          %s114 = smul.u32 8, %s113
          %s116 = ssub.s32 256, 256
          %117 = vsyncadd %s108, %s116
          %s118 = smul.addr %s20, 8
          %s119 = sadd.s32 %s114, %s118
          %s120 = smul.addr %s119, 16
          %s121 = scalar_lea.hbm %s0, %s120
          %s122 = sshll.u32 %s111, 4
          %s123 = int_to_ptr.vmem [resolvable:$true] %s122
          %128 = dma.hbm_to_vmem [thread:$0]  %s121, 256, %s123, %s108, 128, 128, 8
        $region20: #{tpu_custom_call.1} parent=15 // pred_fallthru
          _
      $region16: #{tpu_custom_call.1} parent=5 // pred_fallthru
        _
      %p129 = scmp.le.s32.totalorder 1, %s13
      %p130 = scmp.lt.s32.totalorder %s13, 3
      %p131 = pnand %p129, %p130
      %p132 = pneg %p131
      // Predicated region
      $region21: #{tpu_custom_call.1} parent=5 // pred_check
        _
      $region22: #{tpu_custom_call.1} parent=5 // pred_check_branch
        %134 = sbr.rel (%p131) target = $region24
      $region23: #{tpu_custom_call.1} parent=5 // pred_region
        %s135 = ssub.s32 %s13, 1
        %s136 = sand.u32 %s44, 1
        %s137 = scalar_lea.sflag [#allocation4], %s136
        %s138 = sand.u32 %s44, 1
        %s139 = smul.addr %s138, 16
        %s140 = scalar_lea.vmem [#allocation3], %s139
        // Predicated region
        $region25: #{tpu_custom_call.1} parent=23 // pred_check
          %p141 = pneg %p57
        $region26: #{tpu_custom_call.1} parent=23 // pred_check_branch
          %143 = sbr.rel (%p141) target = $region28
        $region27: #{tpu_custom_call.1} parent=23 // pred_region
          %144 = dma.done %s137, 256
        $region28: #{tpu_custom_call.1} parent=23 // pred_fallthru
          _
        %s145 = sand.u32 %s44, 1
        %s146 = scalar_lea.sflag [#allocation4], %s145
        %s147 = sand.u32 %s44, 1
        %s148 = smul.addr %s147, 16
        %s149 = scalar_lea.vmem [#allocation3], %s148
        %p150 = pneg %p57
        %p151 = pneg %p54
        %p152 = pneg %p85
        %p153 = pneg %p82
        %s154 = sand.u32 %s72, 1
        %s155 = scalar_lea.sflag [#allocation5], %s154
        %s156 = sand.u32 %s72, 1
        %s157 = smul.addr %s156, 16
        %s158 = scalar_lea.vmem [#allocation6], %s157
        %p159 = scmp.lt.s32.totalorder %s23, 0
        %s160 = scalar_select %p159, %s23, 0
        %s161 = smul.u32 8, %s160
        %s162 = smul.u32 8, %s23
        %s163 = ssub.s32 10, %s162
        %p164 = scmp.lt.s32.totalorder %s163, 8
        %s165 = scalar_select %p164, %s163, 8
        %s166 = smul.u32 32, %s165
        %p167 = scmp.eq.s32.totalorder %s23, 0
        // Predicated region
        $region29: #{tpu_custom_call.1} parent=23 // pred_check
          %p168 = pneg %p167
        $region30: #{tpu_custom_call.1} parent=23 // pred_check_branch
          %170 = sbr.rel (%p168) target = $region32
        $region31: #{tpu_custom_call.1} parent=23 // pred_region
          %vm171 = vcmask 0
          %172 = vst.msk [vmem:[#allocation2] sm:$0x1] %vm171, 0.0
        $region32: #{tpu_custom_call.1} parent=23 // pred_fallthru
          _
        %p173 = scmp.lt.s32.totalorder %s23, 1
        // Predicated region
        $region33: #{tpu_custom_call.1} parent=23 // pred_check
          %p174 = pneg %p173
        $region34: #{tpu_custom_call.1} parent=23 // pred_check_branch
          %176 = sbr.rel (%p174) target = $region36
        $region35: #{tpu_custom_call.1} parent=23 // pred_region
          %v177 = vld [vmem:[%s140] sm:$0xff]
          %v178 = vld [vmem:[%s140 + $0x8] sm:$0xff]
          %179 = vst [vmem:[%s158] sm:$0xff] %v177
          %180 = vst [vmem:[%s158 + $0x8] sm:$0xff] %v178
          %v181 = vld [vmem:[%s140] sm:$0xff]
          %v182 = vadd.f32 %v181, 0.0
          %s183 = scalar_lea.vmem %s140, 8 [#allocation3]
          %v184 = vld [vmem:[%s183] sm:$0xff]
          %v185 = vadd.f32 %v182, %v184
          %v186 = vmul.f32 %v185, 0.5
          %v187 = vsub.f32 %v181, %v186
          %v188 = vmul.f32 %v187, %v187
          %v189 = vadd.f32 %v188, 0.0
          %v190 = vsub.f32 %v184, %v186
          %v191 = vmul.f32 %v190, %v190
          %v192 = vadd.f32 %v189, %v191
          %v193 = vmul.f32 %v192, 0.5
          %v194 = vadd.f32 %v193, 1e-08
          %v195 = vrsqrt.pop %v194
          %v196 = vmul.f32 %v194, %v195
          %vm197 = vcmp.eq.f32.partialorder %v194, inf
          %v198 = vsel %vm197, %v194, %v196
          %vm199 = vcmp.eq.f32.partialorder %v194, 0.0
          %v200 = vand.u32 %v194, 2147483648
          %v201 = vsel %vm199, %v200, %v198
          %v202 = vld [vmem:[#allocation2] sm:$0x1]
          %v204 = vlaneseq
          %v205 = vshrl.u32 %v204, 7
          %v206 = vsub.s32 0, %v205
          %v207 = vrot.slane %v201, %v206
          %v208 = vlaneseq
          %v209 = vshrl.u32 %v208, 7
          %v210 = vsub.s32 1, %v209
          %v211 = vrot.slane %v201, %v210
          %v212 = vlaneseq
          %v213 = vshrl.u32 %v212, 7
          %v214 = vsub.s32 2, %v213
          %v215 = vrot.slane %v201, %v214
          %v216 = vlaneseq
          %v217 = vshrl.u32 %v216, 7
          %v218 = vsub.s32 3, %v217
          %v219 = vrot.slane %v201, %v218
          %v220 = vlaneseq
          %v221 = vshrl.u32 %v220, 7
          %v222 = vsub.s32 4, %v221
          %v223 = vrot.slane %v201, %v222
          %v224 = vlaneseq
          %v225 = vshrl.u32 %v224, 7
          %v226 = vsub.s32 5, %v225
          %v227 = vrot.slane %v201, %v226
          %v228 = vlaneseq
          %v229 = vshrl.u32 %v228, 7
          %v230 = vsub.s32 6, %v229
          %v231 = vrot.slane %v201, %v230
          %v232 = vlaneseq
          %v233 = vshrl.u32 %v232, 7
          %v234 = vsub.s32 7, %v233
          %v235 = vrot.slane %v201, %v234
          %vm244 = vcmask 1040384
          %v245 = vsel %vm244, %v207, 0.0
          %v246 = vsel %vm244, %v211, 0.0
          %v247 = vadd.f32 %v245, %v246
          %v248 = vsel %vm244, %v215, 0.0
          %v249 = vadd.f32 %v247, %v248
          %v250 = vsel %vm244, %v219, 0.0
          %v251 = vadd.f32 %v249, %v250
          %v252 = vsel %vm244, %v223, 0.0
          %v253 = vadd.f32 %v251, %v252
          %v254 = vsel %vm244, %v227, 0.0
          %v255 = vadd.f32 %v253, %v254
          %v256 = vsel %vm244, %v231, 0.0
          %v257 = vadd.f32 %v255, %v256
          %v258 = vsel %vm244, %v235, 0.0
          %v259 = vadd.f32 %v257, %v258
          %260 = vadd.xlane.f32.xlu0 %v259
          %v261 = vpop.xlane.xlu0 %260
          %v262 = vadd.f32 %v202, %v261
          %vm263 = vcmask 0
          %264 = vst.msk [vmem:[#allocation2] sm:$0x1] %vm263, %v262
        $region36: #{tpu_custom_call.1} parent=23 // pred_fallthru
          _
        %p265 = scmp.ge.s32.totalorder %s23, 1
        // Predicated region
        $region37: #{tpu_custom_call.1} parent=23 // pred_check
          %p266 = pneg %p265
        $region38: #{tpu_custom_call.1} parent=23 // pred_check_branch
          %268 = sbr.rel (%p266) target = $region40
        $region39: #{tpu_custom_call.1} parent=23 // pred_region
          %v269 = vld [vmem:[#allocation2] sm:$0x1]
          %v270 = vmul.f32 %v269, 0.0009765625
          %272 = vset.pattern.permute.xlu0 0
          %273 = vperm.xlu0 %272, %v270
          %v274 = vpop.permute.xlu0 %273
          %v276 = vlaneseq
          %v277 = vshrl.u32 %v276, 7
          %v278 = vsub.s32 0, %v277
          %v279 = vrot.slane %v274, %v278
          %280 = vst [vmem:[%s158] sm:$0xff] %v279
          %281 = vst [vmem:[%s158 + $0x8] sm:$0xff] %v279
        $region40: #{tpu_custom_call.1} parent=23 // pred_fallthru
          _
        %s282 = sand.u32 %s72, 1
        %s283 = scalar_lea.sflag [#allocation5], %s282
        %s284 = sand.u32 %s72, 1
        %s285 = smul.addr %s284, 16
        %s286 = scalar_lea.vmem [#allocation6], %s285
        // Predicated region
        $region41: #{tpu_custom_call.1} parent=23 // pred_check
          %p287 = pneg %p82
        $region42: #{tpu_custom_call.1} parent=23 // pred_check_branch
          %289 = sbr.rel (%p287) target = $region44
        $region43: #{tpu_custom_call.1} parent=23 // pred_region
          %s290 = smul.u32 8, %s23
          %s291 = ssub.s32 10, %s290
          %p292 = scmp.lt.s32.totalorder %s291, 8
          %s293 = scalar_select %p292, %s291, 8
          %s294 = smul.u32 32, %s293
          %s296 = ssub.s32 256, %s294
          %297 = vsyncadd %s283, %s296
          %p298 = scmp.ne.s32.totalorder 0, %s294
          %s299 = smul.addr %s22, 10
          %s300 = sadd.s32 %s290, %s299
          %s301 = smul.addr %s300, 16
          %s302 = scalar_lea.hbm %s1, %s301
          %s303 = smul.u32 %s293, 2
          %s304 = sshll.u32 %s286, 4
          %s305 = int_to_ptr.vmem [resolvable:$true] %s304
          %s306 = sshll.u32 %s303, 4
          %310 = dma.vmem_to_hbm [thread:$0]  (%p298), %s305, %s306, %s302, %s283, 128, 160, %s293
        $region44: #{tpu_custom_call.1} parent=23 // pred_fallthru
          _
      $region24: #{tpu_custom_call.1} parent=5 // pred_fallthru
        _
      %p311 = scmp.le.s32.totalorder 2, %s13
      // Predicated region
      $region45: #{tpu_custom_call.1} parent=5 // pred_check
        %p312 = pneg %p311
      $region46: #{tpu_custom_call.1} parent=5 // pred_check_branch
        %314 = sbr.rel (%p312) target = $region48
      $region47: #{tpu_custom_call.1} parent=5 // pred_region
        %s315 = ssub.s32 %s13, 2
        // Predicated region
        $region49: #{tpu_custom_call.1} parent=47 // pred_check
          %p316 = pneg %p88
        $region50: #{tpu_custom_call.1} parent=47 // pred_check_branch
          %318 = sbr.rel (%p316) target = $region52
        $region51: #{tpu_custom_call.1} parent=47 // pred_region
          %s319 = sand.u32 %s73, 1
          %s320 = scalar_lea.sflag [#allocation5], %s319
          %s321 = sand.u32 %s73, 1
          %s322 = smul.addr %s321, 16
          %s323 = scalar_lea.vmem [#allocation6], %s322
          %324 = dma.done %s320, 256
        $region52: #{tpu_custom_call.1} parent=47 // pred_fallthru
          _
      $region48: #{tpu_custom_call.1} parent=5 // pred_fallthru
        _
    $region6: #{tpu_custom_call.1} parent=1 // loop_footer
      %s17 = sadd.s32 1, %s13
    $region7: #{tpu_custom_call.1} parent=1 // loop_footer_branch
      %12 = sbr.rel target = $region3
    $region8: #{tpu_custom_call.1} parent=1 // loop_exit
      _
    %325 = vsyncpa [#allocation4], 1
    %s326 = scalar_lea.sflag [#allocation4], 1
    %327 = vsyncpa %s326, 1
    %328 = vsyncpa [#allocation5], 1
    %s329 = scalar_lea.sflag [#allocation5], 1
    %330 = vsyncpa %s329, 1

</llo_original>
